<compile_context>
chip_gen: v7x
topology: tpu7x:2x2x1
jax: 0.10.0
libtpu: 0.0.40
codegen_flags: <defaults>
</compile_context>

<pallas_src>
import jax
import jax.numpy as jnp
from jax.experimental import pallas as pl
from jax.experimental.pallas import tpu as pltpu


# ----------------------------------------------------------------------------------------------
# Kernel
# ----------------------------------------------------------------------------------------------
def _downshuffle_kernel(xa_ref, xb_ref, w_ref, o_ref, xwin_ref, pat_ref):
    # xa_ref : (1, TH, OW+1, 4*C_in)   body rows of the space-to-depth input window
    # xb_ref : (1, 1,  OW+1, 4*C_in)   +1 halo row (row TH of the window)
    # w_ref  : (16*C_in, C_out)        fused conv+unshuffle weight, resident across the grid
    # o_ref  : (1, C_out, TH*OW)       lane-dense NCHW(-flattened) output block
    # xwin_ref : VMEM (TH+1, OW+1, 4*C_in) scratch -- halo-extended window
    # pat_ref  : VMEM (TH, OW, 16*C_in)    scratch -- im2col patches
    TH = xa_ref.shape[1]
    OWp = xa_ref.shape[2]
    K4 = xa_ref.shape[3]
    OW = OWp - 1
    C_out = w_ref.shape[1]

    # Assemble the (TH+1)-row halo window in VMEM (both pieces arrive via pipelined BlockSpecs).
    xwin_ref[0:TH, :, :] = xa_ref[0]
    xwin_ref[TH:TH + 1, :, :] = xb_ref[0]

    # im2col for the fused conv:  patches[oh, ow, (a*2+b)*K4 + m] = xwin[oh+a, ow+b, m]
    # (static unit-stride slices only; the stride-2 structure was absorbed by space-to-depth).
    for a in range(2):
        for b in range(2):
            k0 = (a * 2 + b) * K4
            pat_ref[:, :, k0:k0 + K4] = xwin_ref[a:a + TH, b:b + OW, :]

    # Single MXU contraction, K = 16*C_in, f32 accumulation.
    y = jnp.einsum("hwk,ko->hwo", pat_ref[...], w_ref[...],
                   preferred_element_type=jnp.float32)          # (TH, OW, C_out)

    # Lane-dense store: (TH, OW, C_out) -> (C_out, TH*OW)  (spatial on the 128-lane axis).
    o_ref[0] = y.reshape(TH * OW, C_out).T.astype(o_ref.dtype)


# ----------------------------------------------------------------------------------------------
# Wrapper
# ----------------------------------------------------------------------------------------------
def _pick_tile_rows(OH, OW, C_in, C_out, itemsize, budget_bytes=8 * 2**20):
    """Pick an output-row tile TH that divides OH, keeps blocks lane-legal and fits VMEM."""
    def rup(v, m):
        return ((v + m - 1) // m) * m

    K4 = 4 * C_in
    OWp = OW + 1

    def est(th):
        xa = 2 * th * OWp * rup(K4, 128) * itemsize            # double-buffered body block
        halo = 2 * OWp * rup(K4, 128) * itemsize
        win = (th + 1) * OWp * rup(K4, 128) * itemsize
        pat = th * OW * rup(4 * K4, 128) * itemsize
        out = 2 * rup(C_out, 8) * rup(th * OW, 128) * 4
        return xa + halo + win + pat + out

    divisors = [d for d in range(OH, 0, -1) if OH % d == 0]
    ok = [d for d in divisors if d == OH or (d * OW) % 128 == 0]
    for d in ok:
        if est(d) <= budget_bytes:
            return d
    return min(ok) if ok else OH


def down_shuffle(x, w, *, tile_oh=None, compute_dtype=None):
    """DownShuffle forward.  x: (N, C_in, H, W) NCHW;  w: (C_mid, C_in, 3, 3) OIHW.
    Returns NCHW (N, 4*C_mid, H/2, W/2), matching the PyTorch module."""
    N, C_in, H, W = x.shape
    C_mid = w.shape[0]
    assert w.shape == (C_mid, C_in, 3, 3), w.shape
    assert H % 2 == 0 and W % 2 == 0, "PixelUnshuffle(2) requires even H, W"
    OH, OW = H // 2, W // 2
    C_out = 4 * C_mid
    K4 = 4 * C_in
    KK = 16 * C_in
    dt = x.dtype if compute_dtype is None else jnp.dtype(compute_dtype)

    # ---- single fused prep pass: SAME-pad + space-to-depth(2), channels-last -------------------
    # xprep[n, I, J, (p*2+q)*C_in + ci] = pad(x)[n, ci, 2I+p, 2J+q]
    xp = jnp.pad(x, ((0, 0), (0, 0), (1, 1), (1, 1)))
    xprep = xp.reshape(N, C_in, OH + 1, 2, OW + 1, 2)
    xprep = jnp.transpose(xprep, (0, 2, 4, 3, 5, 1)).reshape(N, OH + 1, OW + 1, K4)
    xprep = xprep.astype(dt)

    # ---- fold PixelUnshuffle into the weight: one (16*C_in, 4*C_mid) matmul matrix --------------
    # Weff[(c,i,j), ci, dh, dw] = w[c, ci, dh-i, dw-j] (zero outside the 3x3 support)
    weff = jnp.zeros((C_mid, 2, 2, C_in, 4, 4), dtype=w.dtype)
    for i in range(2):
        for j in range(2):
            weff = weff.at[:, i, j, :, i:i + 3, j:j + 3].set(w)
    weff = weff.reshape(C_out, C_in, 4, 4)                       # co = c*4 + i*2 + j
    weff = weff.reshape(C_out, C_in, 2, 2, 2, 2)                 # [co, ci, a, p, b, q]  (dh=2a+p, dw=2b+q)
    wmat = jnp.transpose(weff, (2, 4, 3, 5, 1, 0)).reshape(KK, C_out).astype(dt)
    # k-ordering: k = (a*2+b)*4*C_in + (p*2+q)*C_in + ci  -- matches the kernel's im2col packing.

    # ---- tiling ---------------------------------------------------------------------------------
    TH = tile_oh if tile_oh is not None else _pick_tile_rows(
        OH, OW, C_in, C_out, jnp.dtype(dt).itemsize)
    assert OH % TH == 0, (OH, TH)
    assert TH == OH or (TH * OW) % 128 == 0, (TH, OW)            # keep output blocks lane-legal
    T = OH // TH

    out_flat = pl.pallas_call(
        _downshuffle_kernel,
        out_shape=jax.ShapeDtypeStruct((N, C_out, OH * OW), x.dtype),
        grid_spec=pltpu.PrefetchScalarGridSpec(
            num_scalar_prefetch=0,
            grid=(N, T),
            in_specs=[
                # body rows [t*TH, t*TH+TH) of the space-to-depth input
                pl.BlockSpec((1, TH, OW + 1, K4), lambda n, t: (n, t, 0, 0)),
                # +1 halo row (row (t+1)*TH) -- same array, second view
                pl.BlockSpec((1, 1, OW + 1, K4), lambda n, t: (n, (t + 1) * TH, 0, 0)),
                # fused weight, resident across the whole grid
                pl.BlockSpec((KK, C_out), lambda n, t: (0, 0)),
            ],
            out_specs=pl.BlockSpec((1, C_out, TH * OW), lambda n, t: (n, 0, t)),
            scratch_shapes=[
                pltpu.VMEM((TH + 1, OW + 1, K4), dt),            # halo-extended window
                pltpu.VMEM((TH, OW, 4 * K4), dt),                # im2col patches
            ],
        ),
        compiler_params=pltpu.CompilerParams(
            dimension_semantics=("parallel", "parallel"),
            vmem_limit_bytes=32 * 1024 * 1024,
        ),
    )(xprep, xprep, wmat)

    # Free reshape: (N, C_out, OH*OW) is already contiguous NCHW.
    return out_flat.reshape(N, C_out, OH, OW)


# ----------------------------------------------------------------------------------------------
# Pure-JAX reference (for the correctness check)
# ----------------------------------------------------------------------------------------------
def _reference(x_nchw, w_oihw):
    y = jax.lax.conv_general_dilated(
        x_nchw, w_oihw, window_strides=(1, 1), padding="SAME",
        dimension_numbers=("NCHW", "OIHW", "NCHW"))
    N, C, H, W = y.shape
    r = 2
    y = y.reshape(N, C, H // r, r, W // r, r)
    y = jnp.transpose(y, (0, 1, 3, 5, 2, 4))
    return y.reshape(N, C * r * r, H // r, W // r)


if __name__ == "__main__":
    key = jax.random.PRNGKey(0)

    def run_case(N, C_in, out_channels, H, W, tile_oh, k):
        kx, kw = jax.random.split(k)
        C_mid = out_channels // 4
        x = jax.random.normal(kx, (N, C_in, H, W), dtype=jnp.float32)
        fan_in = C_in * 9
        bound = (1.0 / fan_in) ** 0.5
        w = jax.random.uniform(kw, (C_mid, C_in, 3, 3), dtype=jnp.float32,
                               minval=-bound, maxval=bound)
        out = jax.block_until_ready(down_shuffle(x, w, tile_oh=tile_oh))
        ref = _reference(x, w)
        assert out.shape == (N, out_channels, H // 2, W // 2), out.shape
        assert jnp.allclose(out, ref, atol=1e-4, rtol=1e-4), \
            float(jnp.max(jnp.abs(out - ref)))

    k1, k2 = jax.random.split(key)
    # multi-tile path: grid=(2, 2), halo row crossing tile boundary exercised
    run_case(2, 4, 8, 32, 32, 8, k1)
    # single-tile path with auto tile pick, different channel counts / rectangular spatial
    run_case(1, 3, 16, 16, 24, None, k2)

    print("KERNEL_OK")
</pallas_src>

<mosaic_0001>
module attributes {stable_mosaic.version = 11 : i64} {
  func.func @_downshuffle_kernel(%arg0: i32, %arg1: i32, %arg2: memref<1x8x17x16xf32, #tpu.memory_space<vmem>>, %arg3: memref<1x1x17x16xf32, #tpu.memory_space<vmem>>, %arg4: memref<64x8xf32, #tpu.memory_space<vmem>>, %arg5: memref<1x8x128xf32, #tpu.memory_space<vmem>>, %arg6: memref<9x17x16xf32, #tpu.memory_space<vmem>>, %arg7: memref<8x16x64xf32, #tpu.memory_space<vmem>>) attributes {dimension_semantics = [#tpu.dimension_semantics<parallel>, #tpu.dimension_semantics<parallel>], iteration_bounds = array<i64: 2, 2>, scalar_prefetch = 0 : i64, scratch_operands = 2 : i64, tpu.core_type = #tpu.core_type<tc>, window_params = [{transform_indices = @transform_0, window_bounds = array<i64: 1, 8, 17, 16>}, {transform_indices = @transform_1, window_bounds = array<i64: 1, 1, 17, 16>}, {pipeline_mode = #tpu.pipeline_mode<synchronous>, transform_indices = @transform_2, window_bounds = array<i64: 64, 8>}, {transform_indices = @transform_3, window_bounds = array<i64: 1, 8, 128>}]} {
    %c0 = arith.constant 0 : index
    %c0_0 = arith.constant 0 : index
    %c0_1 = arith.constant 0 : index
    %c0_2 = arith.constant 0 : index
    %0 = vector.load %arg2[%c0, %c0_0, %c0_1, %c0_2] : memref<1x8x17x16xf32, #tpu.memory_space<vmem>>, vector<1x8x17x16xf32>
    %1 = vector.shape_cast %0 : vector<1x8x17x16xf32> to vector<8x17x16xf32>
    %c0_3 = arith.constant 0 : index
    %c0_4 = arith.constant 0 : index
    %c0_5 = arith.constant 0 : index
    %2 = vector.load %arg6[%c0_3, %c0_4, %c0_5] : memref<9x17x16xf32, #tpu.memory_space<vmem>>, vector<8x17x16xf32>
    tpu.vector_store %arg6[%c0_3, %c0_4, %c0_5], %1 {strides = array<i32>} : memref<9x17x16xf32, #tpu.memory_space<vmem>>, vector<8x17x16xf32>,
    %c0_6 = arith.constant 0 : index
    %c0_7 = arith.constant 0 : index
    %c0_8 = arith.constant 0 : index
    %c0_9 = arith.constant 0 : index
    %3 = vector.load %arg3[%c0_6, %c0_7, %c0_8, %c0_9] : memref<1x1x17x16xf32, #tpu.memory_space<vmem>>, vector<1x1x17x16xf32>
    %4 = vector.shape_cast %3 : vector<1x1x17x16xf32> to vector<1x17x16xf32>
    %c8 = arith.constant 8 : index
    %c0_10 = arith.constant 0 : index
    %c0_11 = arith.constant 0 : index
    %5 = vector.load %arg6[%c8, %c0_10, %c0_11] : memref<9x17x16xf32, #tpu.memory_space<vmem>>, vector<1x17x16xf32>
    tpu.vector_store %arg6[%c8, %c0_10, %c0_11], %4 {strides = array<i32>} : memref<9x17x16xf32, #tpu.memory_space<vmem>>, vector<1x17x16xf32>,
    %c0_12 = arith.constant 0 : index
    %c0_13 = arith.constant 0 : index
    %c0_14 = arith.constant 0 : index
    %6 = vector.load %arg6[%c0_12, %c0_13, %c0_14] : memref<9x17x16xf32, #tpu.memory_space<vmem>>, vector<8x16x16xf32>
    %c0_15 = arith.constant 0 : index
    %c0_16 = arith.constant 0 : index
    %c0_17 = arith.constant 0 : index
    %7 = vector.load %arg7[%c0_15, %c0_16, %c0_17] : memref<8x16x64xf32, #tpu.memory_space<vmem>>, vector<8x16x16xf32>
    tpu.vector_store %arg7[%c0_15, %c0_16, %c0_17], %6 {strides = array<i32>} : memref<8x16x64xf32, #tpu.memory_space<vmem>>, vector<8x16x16xf32>,
    %c0_18 = arith.constant 0 : index
    %c1 = arith.constant 1 : index
    %c0_19 = arith.constant 0 : index
    %8 = vector.load %arg6[%c0_18, %c1, %c0_19] : memref<9x17x16xf32, #tpu.memory_space<vmem>>, vector<8x16x16xf32>
    %c0_20 = arith.constant 0 : index
    %c0_21 = arith.constant 0 : index
    %c16 = arith.constant 16 : index
    %9 = vector.load %arg7[%c0_20, %c0_21, %c16] : memref<8x16x64xf32, #tpu.memory_space<vmem>>, vector<8x16x16xf32>
    tpu.vector_store %arg7[%c0_20, %c0_21, %c16], %8 {strides = array<i32>} : memref<8x16x64xf32, #tpu.memory_space<vmem>>, vector<8x16x16xf32>,
    %c1_22 = arith.constant 1 : index
    %c0_23 = arith.constant 0 : index
    %c0_24 = arith.constant 0 : index
    %10 = vector.load %arg6[%c1_22, %c0_23, %c0_24] : memref<9x17x16xf32, #tpu.memory_space<vmem>>, vector<8x16x16xf32>
    %c0_25 = arith.constant 0 : index
    %c0_26 = arith.constant 0 : index
    %c32 = arith.constant 32 : index
    %11 = vector.load %arg7[%c0_25, %c0_26, %c32] : memref<8x16x64xf32, #tpu.memory_space<vmem>>, vector<8x16x16xf32>
    tpu.vector_store %arg7[%c0_25, %c0_26, %c32], %10 {strides = array<i32>} : memref<8x16x64xf32, #tpu.memory_space<vmem>>, vector<8x16x16xf32>,
    %c1_27 = arith.constant 1 : index
    %c1_28 = arith.constant 1 : index
    %c0_29 = arith.constant 0 : index
    %12 = vector.load %arg6[%c1_27, %c1_28, %c0_29] : memref<9x17x16xf32, #tpu.memory_space<vmem>>, vector<8x16x16xf32>
    %c0_30 = arith.constant 0 : index
    %c0_31 = arith.constant 0 : index
    %c48 = arith.constant 48 : index
    %13 = vector.load %arg7[%c0_30, %c0_31, %c48] : memref<8x16x64xf32, #tpu.memory_space<vmem>>, vector<8x16x16xf32>
    tpu.vector_store %arg7[%c0_30, %c0_31, %c48], %12 {strides = array<i32>} : memref<8x16x64xf32, #tpu.memory_space<vmem>>, vector<8x16x16xf32>,
    %c0_32 = arith.constant 0 : index
    %c0_33 = arith.constant 0 : index
    %c0_34 = arith.constant 0 : index
    %14 = vector.load %arg7[%c0_32, %c0_33, %c0_34] : memref<8x16x64xf32, #tpu.memory_space<vmem>>, vector<8x16x64xf32>
    %c0_35 = arith.constant 0 : index
    %c0_36 = arith.constant 0 : index
    %15 = vector.load %arg4[%c0_35, %c0_36] : memref<64x8xf32, #tpu.memory_space<vmem>>, vector<64x8xf32>
    "tpu.trace_start"() <{level = 10 : i32, message = "hwk,ko->hwo"}> : () -> ()
    %cst = arith.constant dense<0.000000e+00> : vector<8x16x8xf32>
    %16 = tpu.matmul %14, %15, %cst {dimension_numbers = #tpu.dot_dimension_numbers<[2], [0], [0, 1], [1], [0, 0, 0, 1, 1, 1], [], []>} : vector<8x16x64xf32>, vector<64x8xf32>, vector<8x16x8xf32> -> vector<8x16x8xf32>
    "tpu.trace_stop"() : () -> ()
    %17 = vector.shape_cast %16 : vector<8x16x8xf32> to vector<128x8xf32>
    %18 = tpu.transpose %17, [1, 0] : vector<128x8xf32> -> vector<8x128xf32>
    %c0_37 = arith.constant 0 : index
    %c0_38 = arith.constant 0 : index
    %c0_39 = arith.constant 0 : index
    %19 = vector.load %arg5[%c0_37, %c0_38, %c0_39] : memref<1x8x128xf32, #tpu.memory_space<vmem>>, vector<1x8x128xf32>
    %20 = vector.shape_cast %19 : vector<1x8x128xf32> to vector<8x128xf32>
    %21 = vector.shape_cast %18 : vector<8x128xf32> to vector<1x8x128xf32>
    tpu.vector_store %arg5[%c0_37, %c0_38, %c0_39], %21 {strides = array<i32>} : memref<1x8x128xf32, #tpu.memory_space<vmem>>, vector<1x8x128xf32>,
    return
  }
  func.func @transform_0(%arg0: i32, %arg1: i32) -> (i32, i32, i32, i32) {
    %c0_i32 = arith.constant 0 : i32
    %c0_i32_0 = arith.constant 0 : i32
    %c0_i32_1 = arith.constant 0 : i32
    return %arg0, %arg1, %c0_i32, %c0_i32_0 : i32, i32, i32, i32
  }
  func.func @transform_1(%arg0: i32, %arg1: i32) -> (i32, i32, i32, i32) {
    %c1_i32 = arith.constant 1 : i32
    %0 = arith.addi %arg1, %c1_i32 : i32
    %c8_i32 = arith.constant 8 : i32
    %1 = arith.muli %0, %c8_i32 : i32
    %c0_i32 = arith.constant 0 : i32
    %c0_i32_0 = arith.constant 0 : i32
    %c0_i32_1 = arith.constant 0 : i32
    return %arg0, %1, %c0_i32, %c0_i32_0 : i32, i32, i32, i32
  }
  func.func @transform_2(%arg0: i32, %arg1: i32) -> (i32, i32) {
    %c0_i32 = arith.constant 0 : i32
    %c0_i32_0 = arith.constant 0 : i32
    %c0_i32_1 = arith.constant 0 : i32
    return %c0_i32, %c0_i32_0 : i32, i32
  }
  func.func @transform_3(%arg0: i32, %arg1: i32) -> (i32, i32, i32) {
    %c0_i32 = arith.constant 0 : i32
    %c0_i32_0 = arith.constant 0 : i32
    return %arg0, %c0_i32, %arg1 : i32, i32, i32
  }
}

</mosaic_0001>

<llo_original>
// kernel: tpu_custom_call.1
$region0: #{tpu_custom_call.1}
  #allocation0 [shape = 'u32[]', space=smem, size = 0x4, offset = 0x4, fixed_abs, tag = 'smem constant byte address 0x4 - core index']
  #allocation1 [shape = 'u32[144,128]{1,0:T(1,128)}', space=vmem, size = 0x12000, scoped, tag = 'internal scratch']
  #allocation2 [shape = 'f32[9,17,16]{2,1,0:T(8,128)}', space=vmem, size = 0x1b000, scoped, tag = 'scratch operand']
  #allocation3 [shape = 'f32[8,16,64]{2,1,0:T(8,128)}', space=vmem, size = 0x10000, scoped, tag = 'scratch operand']
  %s0 = inlined_call_operand.vmem [shape: f32[2,17,17,16], index: 0, kind: input, shape index: {}]
  %s1 = inlined_call_operand.vmem [shape: f32[2,17,17,16], index: 1, kind: input, shape index: {}]
  %s2 = inlined_call_operand.vmem [shape: f32[64,8], index: 2, kind: input, shape index: {}]
  %s3 = inlined_call_operand.hbm [shape: f32[2,8,256], index: 3, kind: output, shape index: {}]
  %s4 = sld [smem:[#allocation0]]
  $region45: #{tpu_custom_call.1} parent=0
    _
  %s6 = ssub.s32 1, %s4
  %s7 = scalar_select 0, %s6, %s4
  $region1: #{tpu_custom_call.1} parent=0
    #allocation4 [shape = 'u8[8192]{0}', space=vmem, size = 0x2000, scoped, tag = 'output window, operand 0']
    #allocation5 [shape = 's32[2]{0}', space=sflag, size = 0x8, scoped, tag = 'scoped memory for tpu_custom_call.1']
    %8 = vsyncpa [#allocation5], 0
    %s9 = scalar_lea.sflag [#allocation5], 1
    %10 = vsyncpa %s9, 0
    loop: start=0, step=1, limit=6
    $region2: #{tpu_custom_call.1} parent=1 // loop_pre_header
      _
    $region3: #{tpu_custom_call.1} parent=1 // loop_header
      %s12 = sphi 0, %s16
      %p13 = scmp.ge.s32.totalorder %s12, 6
      %s19 = sphi 0, %s31
      %s20 = sphi 0, %s27
      %s21 = sphi 0, %s19
      %s22 = sphi 0, %s20
      %s23 = sphi 0, %s21
      %s24 = sphi 0, %s22
      %s36 = sphi 0, %s38
      %s39 = sphi 0, %s36
      %s40 = sphi 0, %s39
      %s56 = sphi 0, %s40
      %s68 = sphi 0, %s70
      %s71 = sphi 0, %s68
      %s72 = sphi 0, %s71
      %s88 = sphi 0, %s72
      %s92 = sphi 0, %s92
      %s94 = sphi 0, %s92
      %s95 = sphi 0, %s94
      %s109 = sphi 0, %s95
      %s117 = sphi 0, %s119
      %s120 = sphi 0, %s117
      %s121 = sphi 0, %s120
      %s137 = sphi 0, %s121
    $region4: #{tpu_custom_call.1} parent=1 // loop_header_branch
      %15 = sbr.rel (%p13) target = $region8
    $region5: #{tpu_custom_call.1} parent=1 // loop_body
      %s17 = ssub.s32 %s12, 1
      %s18 = ssub.s32 %s12, 2
      %s25 = sadd.s32 1, %s20
      %p26 = scmp.ge.s32.totalorder %s25, 2
      %s27 = scalar_select %p26, 0, %s25
      %s28 = sadd.s32 1, %s19
      %s29 = scalar_select %p26, %s28, %s19
      %p30 = scmp.ge.s32.totalorder %s29, 2
      %s31 = scalar_select %p30, 0, %s29
      %s32 = ssub.s32 %s19, %s31
      %s33 = ssub.s32 %s20, %s27
      %s34 = sor.u32 %s32, %s33
      %p35 = scmp.eq.s32.totalorder %s34, 0
      %s37 = sadd.s32 %s36, 1
      %s38 = scalar_select %p35, %s36, %s37
      %p41 = pneg %p35
      %p42 = scmp.eq.s32.totalorder %s12, 3
      %p43 = por %p41, %p42
      %p44 = scmp.ne.s32.totalorder %s36, %s39
      %p45 = scmp.eq.s32.totalorder %s12, 0
      %p46 = por %p44, %p45
      %p47 = scmp.ne.s32.totalorder %s36, %s39
      %p48 = scmp.eq.s32.totalorder %s17, 3
      %p49 = por %p47, %p48
      %p50 = scmp.ne.s32.totalorder %s39, %s40
      %p51 = scmp.eq.s32.totalorder %s17, 0
      %p52 = por %p50, %p51
      %p53 = scmp.ne.s32.totalorder %s39, %s40
      %p54 = scmp.eq.s32.totalorder %s18, 3
      %p55 = por %p53, %p54
      %p57 = scmp.ne.s32.totalorder %s40, %s56
      %p58 = scmp.eq.s32.totalorder %s18, 0
      %p59 = por %p57, %p58
      %s60 = sadd.s32 %s20, 1
      %s61 = smul.u32 %s60, 8
      %s62 = sadd.s32 %s27, 1
      %s63 = smul.u32 %s62, 8
      %s64 = ssub.s32 %s19, %s31
      %s65 = ssub.s32 %s61, %s63
      %s66 = sor.u32 %s64, %s65
      %p67 = scmp.eq.s32.totalorder %s66, 0
      %s69 = sadd.s32 %s68, 1
      %s70 = scalar_select %p67, %s68, %s69
      %p73 = pneg %p67
      %p74 = scmp.eq.s32.totalorder %s12, 3
      %p75 = por %p73, %p74
      %p76 = scmp.ne.s32.totalorder %s68, %s71
      %p77 = scmp.eq.s32.totalorder %s12, 0
      %p78 = por %p76, %p77
      %p79 = scmp.ne.s32.totalorder %s68, %s71
      %p80 = scmp.eq.s32.totalorder %s17, 3
      %p81 = por %p79, %p80
      %p82 = scmp.ne.s32.totalorder %s71, %s72
      %p83 = scmp.eq.s32.totalorder %s17, 0
      %p84 = por %p82, %p83
      %p85 = scmp.ne.s32.totalorder %s71, %s72
      %p86 = scmp.eq.s32.totalorder %s18, 3
      %p87 = por %p85, %p86
      %p89 = scmp.ne.s32.totalorder %s72, %s88
      %p90 = scmp.eq.s32.totalorder %s18, 0
      %p91 = por %p89, %p90
      %s93 = sadd.s32 %s92, 1
      %p96 = scmp.eq.s32.totalorder %s12, 3
      %p97 = scmp.ne.s32.totalorder %s92, %s94
      %p98 = scmp.eq.s32.totalorder %s12, 0
      %p99 = por %p97, %p98
      %p100 = scmp.ne.s32.totalorder %s92, %s94
      %p101 = scmp.eq.s32.totalorder %s17, 3
      %p102 = por %p100, %p101
      %p103 = scmp.ne.s32.totalorder %s94, %s95
      %p104 = scmp.eq.s32.totalorder %s17, 0
      %p105 = por %p103, %p104
      %p106 = scmp.ne.s32.totalorder %s94, %s95
      %p107 = scmp.eq.s32.totalorder %s18, 3
      %p108 = por %p106, %p107
      %p110 = scmp.ne.s32.totalorder %s95, %s109
      %p111 = scmp.eq.s32.totalorder %s18, 0
      %p112 = por %p110, %p111
      %s113 = ssub.s32 %s19, %s31
      %s114 = ssub.s32 %s20, %s27
      %s115 = sor.u32 %s113, %s114
      %p116 = scmp.eq.s32.totalorder %s115, 0
      %s118 = sadd.s32 %s117, 1
      %s119 = scalar_select %p116, %s117, %s118
      %p122 = pneg %p116
      %p123 = scmp.eq.s32.totalorder %s12, 3
      %p124 = por %p122, %p123
      %p125 = scmp.ne.s32.totalorder %s117, %s120
      %p126 = scmp.eq.s32.totalorder %s12, 0
      %p127 = por %p125, %p126
      %p128 = scmp.ne.s32.totalorder %s117, %s120
      %p129 = scmp.eq.s32.totalorder %s17, 3
      %p130 = por %p128, %p129
      %p131 = scmp.ne.s32.totalorder %s120, %s121
      %p132 = scmp.eq.s32.totalorder %s17, 0
      %p133 = por %p131, %p132
      %p134 = scmp.ne.s32.totalorder %s120, %s121
      %p135 = scmp.eq.s32.totalorder %s18, 3
      %p136 = por %p134, %p135
      %p138 = scmp.ne.s32.totalorder %s121, %s137
      %p139 = scmp.eq.s32.totalorder %s18, 0
      %p140 = por %p138, %p139
      %p141 = scmp.le.s32.totalorder 1, %s12
      %p142 = scmp.lt.s32.totalorder %s12, 5
      %p143 = pnand %p141, %p142
      %p144 = pneg %p143
      // Predicated region
      $region9: #{tpu_custom_call.1} parent=5 // pred_check
        _
      $region10: #{tpu_custom_call.1} parent=5 // pred_check_branch
        %146 = sbr.rel (%p143) target = $region12
      $region11: #{tpu_custom_call.1} parent=5 // pred_region
        %s147 = ssub.s32 %s12, 1
        // Predicated region
        $region13: #{tpu_custom_call.1} parent=11 // pred_check
          %p148 = pneg %p105
        $region14: #{tpu_custom_call.1} parent=11 // pred_check_branch
          %150 = sbr.rel (%p148) target = $region16
        $region15: #{tpu_custom_call.1} parent=11 // pred_region
          _
        $region16: #{tpu_custom_call.1} parent=11 // pred_fallthru
          _
      $region12: #{tpu_custom_call.1} parent=5 // pred_fallthru
        _
      %p151 = scmp.lt.s32.totalorder %s12, 4
      // Predicated region
      $region17: #{tpu_custom_call.1} parent=5 // pred_check
        %p152 = pneg %p151
      $region18: #{tpu_custom_call.1} parent=5 // pred_check_branch
        %154 = sbr.rel (%p152) target = $region20
      $region19: #{tpu_custom_call.1} parent=5 // pred_region
        // Predicated region
        $region21: #{tpu_custom_call.1} parent=19 // pred_check
          %p155 = pneg %p46
        $region22: #{tpu_custom_call.1} parent=19 // pred_check_branch
          %157 = sbr.rel (%p155) target = $region24
        $region23: #{tpu_custom_call.1} parent=19 // pred_region
          %s158 = smul.u32 8, %s20
          %s159 = ssub.s32 17, %s158
          %p160 = scmp.lt.s32.totalorder %s159, 8
          %s161 = scalar_select %p160, %s159, 8
          %s162 = smul.u32 128, %s161
          %s163 = smul.u32 %s162, 3
          %p164 = scmp.lt.s32.totalorder %s19, 1
          %s165 = scalar_select %p164, %s19, 1
          %p166 = scmp.lt.s32.totalorder %s158, 16
          %s167 = scalar_select %p166, %s158, 16
          %s168 = smul.addr %s167, 3
          %s169 = smul.addr %s165, 51
          %s170 = sadd.s32 %s168, %s169
          %s171 = smul.addr %s170, 8
          %s172 = scalar_lea.vmem %s0, %s171
          %s173 = smul.u32 8, %s20
          %s174 = ssub.s32 17, %s173
          %p175 = scmp.lt.s32.totalorder %s174, 8
          %s176 = scalar_select %p175, %s174, 8
          %s177 = smul.u32 128, %s176
          %s178 = smul.u32 %s177, 3
        $region24: #{tpu_custom_call.1} parent=19 // pred_fallthru
          _
        // Predicated region
        $region25: #{tpu_custom_call.1} parent=19 // pred_check
          %p179 = pneg %p78
        $region26: #{tpu_custom_call.1} parent=19 // pred_check_branch
          %181 = sbr.rel (%p179) target = $region28
        $region27: #{tpu_custom_call.1} parent=19 // pred_region
          %s182 = sadd.s32 %s20, 1
          %s183 = smul.u32 %s182, 8
          %p184 = scmp.lt.s32.totalorder %s19, 1
          %s185 = scalar_select %p184, %s19, 1
          %p186 = scmp.lt.s32.totalorder %s183, 16
          %s187 = scalar_select %p186, %s183, 16
          %s188 = smul.addr %s187, 3
          %s189 = smul.addr %s185, 51
          %s190 = sadd.s32 %s188, %s189
          %s191 = smul.addr %s190, 8
          %s192 = scalar_lea.vmem %s1, %s191
          %s193 = sadd.s32 %s20, 1
          %s194 = smul.u32 %s193, 8
        $region28: #{tpu_custom_call.1} parent=19 // pred_fallthru
          _
      $region20: #{tpu_custom_call.1} parent=5 // pred_fallthru
        _
      %p195 = scmp.le.s32.totalorder 1, %s12
      %p196 = scmp.lt.s32.totalorder %s12, 5
      %p197 = pnand %p195, %p196
      %p198 = pneg %p197
      // Predicated region
      $region29: #{tpu_custom_call.1} parent=5 // pred_check
        _
      $region30: #{tpu_custom_call.1} parent=5 // pred_check_branch
        %200 = sbr.rel (%p197) target = $region32
      $region31: #{tpu_custom_call.1} parent=5 // pred_region
        %s201 = ssub.s32 %s12, 1
        %s202 = smul.u32 8, %s22
        %s203 = ssub.s32 17, %s202
        %p204 = scmp.lt.s32.totalorder %s203, 8
        %s205 = scalar_select %p204, %s203, 8
        %s206 = smul.u32 128, %s205
        %s207 = smul.u32 %s206, 3
        %p208 = scmp.lt.s32.totalorder %s21, 1
        %s209 = scalar_select %p208, %s21, 1
        %p210 = scmp.lt.s32.totalorder %s202, 16
        %s211 = scalar_select %p210, %s202, 16
        %s212 = smul.addr %s211, 3
        %s213 = smul.addr %s209, 51
        %s214 = sadd.s32 %s212, %s213
        %s215 = smul.addr %s214, 8
        %s216 = scalar_lea.vmem %s0, %s215
        %p217 = pneg %p52
        %p218 = pneg %p49
        %s219 = sadd.s32 %s22, 1
        %s220 = smul.u32 %s219, 8
        %p221 = scmp.lt.s32.totalorder %s21, 1
        %s222 = scalar_select %p221, %s21, 1
        %p223 = scmp.lt.s32.totalorder %s220, 16
        %s224 = scalar_select %p223, %s220, 16
        %s225 = smul.addr %s224, 3
        %s226 = smul.addr %s222, 51
        %s227 = sadd.s32 %s225, %s226
        %s228 = smul.addr %s227, 8
        %s229 = scalar_lea.vmem %s1, %s228
        %p230 = pneg %p84
        %p231 = pneg %p81
        %p232 = pneg %p105
        %p233 = pneg %p102
        %p234 = pneg %p133
        %p235 = pneg %p130
        %s236 = sand.u32 %s120, 1
        %s237 = scalar_lea.sflag [#allocation5], %s236
        %s238 = sand.u32 %s120, 1
        %s239 = smul.addr %s238, 8
        %s240 = scalar_lea.vmem [#allocation4], %s239
        %s241 = smul.u32 8, %s22
        %s242 = ssub.s32 17, %s241
        %p243 = scmp.lt.s32.totalorder %s242, 8
        %s244 = scalar_select %p243, %s242, 8
        %s245 = smul.u32 128, %s244
        %s246 = smul.u32 %s245, 3
        %p247 = scmp.lt.s32.totalorder %s21, 1
        %s248 = scalar_select %p247, %s21, 1
        %p249 = scmp.lt.s32.totalorder %s241, 16
        %s250 = scalar_select %p249, %s241, 16
        %s251 = smul.addr %s250, 3
        %s252 = smul.addr %s248, 51
        %s253 = sadd.s32 %s251, %s252
        %s254 = smul.addr %s253, 8
        %s255 = scalar_lea.vmem %s0, %s254
        %s256 = smul.u32 8, %s22
        %s257 = ssub.s32 17, %s256
        %p258 = scmp.lt.s32.totalorder %s257, 8
        %s259 = scalar_select %p258, %s257, 8
        %s260 = smul.u32 128, %s259
        %s261 = smul.u32 %s260, 3
        %s262 = sadd.s32 %s22, 1
        %s263 = smul.u32 %s262, 8
        %p264 = scmp.lt.s32.totalorder %s21, 1
        %s265 = scalar_select %p264, %s21, 1
        %p266 = scmp.lt.s32.totalorder %s263, 16
        %s267 = scalar_select %p266, %s263, 16
        %s268 = smul.addr %s267, 3
        %s269 = smul.addr %s265, 51
        %s270 = sadd.s32 %s268, %s269
        %s271 = smul.addr %s270, 8
        %s272 = scalar_lea.vmem %s1, %s271
        %s273 = sadd.s32 %s22, 1
        %s274 = smul.u32 %s273, 8
        %v275 = vld [vmem:[%s255] sm:$0xff]
        %v276 = vld [vmem:[%s255 + $0x8] sm:$0xff]
        %v277 = vld [vmem:[%s255 + $0x10] sm:$0x1]
        %v278 = vld [vmem:[%s255 + $0x18] sm:$0xff]
        %v279 = vld [vmem:[%s255 + $0x20] sm:$0xff]
        %v280 = vld [vmem:[%s255 + $0x28] sm:$0x1]
        %v281 = vld [vmem:[%s255 + $0x30] sm:$0xff]
        %v282 = vld [vmem:[%s255 + $0x38] sm:$0xff]
        %v283 = vld [vmem:[%s255 + $0x40] sm:$0x1]
        %v284 = vld [vmem:[%s255 + $0x48] sm:$0xff]
        %v285 = vld [vmem:[%s255 + $0x50] sm:$0xff]
        %v286 = vld [vmem:[%s255 + $0x58] sm:$0x1]
        %v287 = vld [vmem:[%s255 + $0x60] sm:$0xff]
        %v288 = vld [vmem:[%s255 + $0x68] sm:$0xff]
        %v289 = vld [vmem:[%s255 + $0x70] sm:$0x1]
        %v290 = vld [vmem:[%s255 + $0x78] sm:$0xff]
        %v291 = vld [vmem:[%s255 + $0x80] sm:$0xff]
        %v292 = vld [vmem:[%s255 + $0x88] sm:$0x1]
        %v293 = vld [vmem:[%s255 + $0x90] sm:$0xff]
        %v294 = vld [vmem:[%s255 + $0x98] sm:$0xff]
        %v295 = vld [vmem:[%s255 + $0xa0] sm:$0x1]
        %v296 = vld [vmem:[%s255 + $0xa8] sm:$0xff]
        %v297 = vld [vmem:[%s255 + $0xb0] sm:$0xff]
        %v298 = vld [vmem:[%s255 + $0xb8] sm:$0x1]
        %vm299 = vcmask 130048
        %300 = vst.msk [vmem:[#allocation2] sm:$0xff] %vm299, %v275
        %301 = vst.msk [vmem:[#allocation2 + $0x8] sm:$0xff] %vm299, %v276
        %vm302 = vcmask 122880
        %303 = vst.msk [vmem:[#allocation2 + $0x10] sm:$0x1] %vm302, %v277
        %304 = vst.msk [vmem:[#allocation2 + $0x18] sm:$0xff] %vm299, %v278
        %305 = vst.msk [vmem:[#allocation2 + $0x20] sm:$0xff] %vm299, %v279
        %306 = vst.msk [vmem:[#allocation2 + $0x28] sm:$0x1] %vm302, %v280
        %307 = vst.msk [vmem:[#allocation2 + $0x30] sm:$0xff] %vm299, %v281
        %308 = vst.msk [vmem:[#allocation2 + $0x38] sm:$0xff] %vm299, %v282
        %309 = vst.msk [vmem:[#allocation2 + $0x40] sm:$0x1] %vm302, %v283
        %310 = vst.msk [vmem:[#allocation2 + $0x48] sm:$0xff] %vm299, %v284
        %311 = vst.msk [vmem:[#allocation2 + $0x50] sm:$0xff] %vm299, %v285
        %312 = vst.msk [vmem:[#allocation2 + $0x58] sm:$0x1] %vm302, %v286
        %313 = vst.msk [vmem:[#allocation2 + $0x60] sm:$0xff] %vm299, %v287
        %314 = vst.msk [vmem:[#allocation2 + $0x68] sm:$0xff] %vm299, %v288
        %315 = vst.msk [vmem:[#allocation2 + $0x70] sm:$0x1] %vm302, %v289
        %316 = vst.msk [vmem:[#allocation2 + $0x78] sm:$0xff] %vm299, %v290
        %317 = vst.msk [vmem:[#allocation2 + $0x80] sm:$0xff] %vm299, %v291
        %318 = vst.msk [vmem:[#allocation2 + $0x88] sm:$0x1] %vm302, %v292
        %319 = vst.msk [vmem:[#allocation2 + $0x90] sm:$0xff] %vm299, %v293
        %320 = vst.msk [vmem:[#allocation2 + $0x98] sm:$0xff] %vm299, %v294
        %321 = vst.msk [vmem:[#allocation2 + $0xa0] sm:$0x1] %vm302, %v295
        %322 = vst.msk [vmem:[#allocation2 + $0xa8] sm:$0xff] %vm299, %v296
        %323 = vst.msk [vmem:[#allocation2 + $0xb0] sm:$0xff] %vm299, %v297
        %324 = vst.msk [vmem:[#allocation2 + $0xb8] sm:$0x1] %vm302, %v298
        %v325 = vld [vmem:[%s272] sm:$0xff]
        %v326 = vld [vmem:[%s272 + $0x8] sm:$0xff]
        %v327 = vld [vmem:[%s272 + $0x10] sm:$0x1]
        %s328 = scalar_lea.vmem [#allocation2], 192
        %329 = vst.msk [vmem:[%s328] sm:$0xff] %vm299, %v325
        %330 = vst.msk [vmem:[%s328 + $0x8] sm:$0xff] %vm299, %v326
        %331 = vst.msk [vmem:[%s328 + $0x10] sm:$0x1] %vm302, %v327
        %v332 = vld [vmem:[#allocation2] sm:$0xff]
        %v333 = vld [vmem:[#allocation2 + $0x8] sm:$0xff]
        %v334 = vld [vmem:[#allocation2 + $0x18] sm:$0xff]
        %v335 = vld [vmem:[#allocation2 + $0x20] sm:$0xff]
        %v336 = vld [vmem:[#allocation2 + $0x30] sm:$0xff]
        %v337 = vld [vmem:[#allocation2 + $0x38] sm:$0xff]
        %v338 = vld [vmem:[#allocation2 + $0x48] sm:$0xff]
        %v339 = vld [vmem:[#allocation2 + $0x50] sm:$0xff]
        %v340 = vld [vmem:[#allocation2 + $0x60] sm:$0xff]
        %v341 = vld [vmem:[#allocation2 + $0x68] sm:$0xff]
        %v342 = vld [vmem:[#allocation2 + $0x78] sm:$0xff]
        %v343 = vld [vmem:[#allocation2 + $0x80] sm:$0xff]
        %v344 = vld [vmem:[#allocation2 + $0x90] sm:$0xff]
        %v345 = vld [vmem:[#allocation2 + $0x98] sm:$0xff]
        %v346 = vld [vmem:[#allocation2 + $0xa8] sm:$0xff]
        %v347 = vld [vmem:[#allocation2 + $0xb0] sm:$0xff]
        %348 = vst.msk [vmem:[#allocation3] sm:$0xff] %vm299, %v332
        %349 = vst.msk [vmem:[#allocation3 + $0x8] sm:$0xff] %vm299, %v333
        %350 = vst.msk [vmem:[#allocation3 + $0x10] sm:$0xff] %vm299, %v334
        %351 = vst.msk [vmem:[#allocation3 + $0x18] sm:$0xff] %vm299, %v335
        %352 = vst.msk [vmem:[#allocation3 + $0x20] sm:$0xff] %vm299, %v336
        %353 = vst.msk [vmem:[#allocation3 + $0x28] sm:$0xff] %vm299, %v337
        %354 = vst.msk [vmem:[#allocation3 + $0x30] sm:$0xff] %vm299, %v338
        %355 = vst.msk [vmem:[#allocation3 + $0x38] sm:$0xff] %vm299, %v339
        %356 = vst.msk [vmem:[#allocation3 + $0x40] sm:$0xff] %vm299, %v340
        %357 = vst.msk [vmem:[#allocation3 + $0x48] sm:$0xff] %vm299, %v341
        %358 = vst.msk [vmem:[#allocation3 + $0x50] sm:$0xff] %vm299, %v342
        %359 = vst.msk [vmem:[#allocation3 + $0x58] sm:$0xff] %vm299, %v343
        %360 = vst.msk [vmem:[#allocation3 + $0x60] sm:$0xff] %vm299, %v344
        %361 = vst.msk [vmem:[#allocation3 + $0x68] sm:$0xff] %vm299, %v345
        %362 = vst.msk [vmem:[#allocation3 + $0x70] sm:$0xff] %vm299, %v346
        %363 = vst.msk [vmem:[#allocation3 + $0x78] sm:$0xff] %vm299, %v347
        %v364 = vld [vmem:[#allocation2 + $0x1] sm:$0xff]
        %v365 = vld [vmem:[#allocation2 + $0x9] sm:$0xff]
        %v366 = vld [vmem:[#allocation2 + $0x19] sm:$0xff]
        %v367 = vld [vmem:[#allocation2 + $0x21] sm:$0xff]
        %v368 = vld [vmem:[#allocation2 + $0x31] sm:$0xff]
        %v369 = vld [vmem:[#allocation2 + $0x39] sm:$0xff]
        %v370 = vld [vmem:[#allocation2 + $0x49] sm:$0xff]
        %v371 = vld [vmem:[#allocation2 + $0x51] sm:$0xff]
        %v372 = vld [vmem:[#allocation2 + $0x61] sm:$0xff]
        %v373 = vld [vmem:[#allocation2 + $0x69] sm:$0xff]
        %v374 = vld [vmem:[#allocation2 + $0x79] sm:$0xff]
        %v375 = vld [vmem:[#allocation2 + $0x81] sm:$0xff]
        %v376 = vld [vmem:[#allocation2 + $0x91] sm:$0xff]
        %v377 = vld [vmem:[#allocation2 + $0x99] sm:$0xff]
        %v378 = vld [vmem:[#allocation2 + $0xa9] sm:$0xff]
        %v379 = vld [vmem:[#allocation2 + $0xb1] sm:$0xff]
        %396 = vrot.lane.b32.xlu0 %v364, 16
        %v397 = vpop.permute.xlu0 %396
        %398 = vrot.lane.b32.xlu0 %v365, 16
        %v399 = vpop.permute.xlu0 %398
        %400 = vrot.lane.b32.xlu0 %v366, 16
        %v401 = vpop.permute.xlu0 %400
        %402 = vrot.lane.b32.xlu0 %v367, 16
        %v403 = vpop.permute.xlu0 %402
        %404 = vrot.lane.b32.xlu0 %v368, 16
        %v405 = vpop.permute.xlu0 %404
        %406 = vrot.lane.b32.xlu0 %v369, 16
        %v407 = vpop.permute.xlu0 %406
        %408 = vrot.lane.b32.xlu0 %v370, 16
        %v409 = vpop.permute.xlu0 %408
        %410 = vrot.lane.b32.xlu0 %v371, 16
        %v411 = vpop.permute.xlu0 %410
        %412 = vrot.lane.b32.xlu0 %v372, 16
        %v413 = vpop.permute.xlu0 %412
        %414 = vrot.lane.b32.xlu0 %v373, 16
        %v415 = vpop.permute.xlu0 %414
        %416 = vrot.lane.b32.xlu0 %v374, 16
        %v417 = vpop.permute.xlu0 %416
        %418 = vrot.lane.b32.xlu0 %v375, 16
        %v419 = vpop.permute.xlu0 %418
        %420 = vrot.lane.b32.xlu0 %v376, 16
        %v421 = vpop.permute.xlu0 %420
        %422 = vrot.lane.b32.xlu0 %v377, 16
        %v423 = vpop.permute.xlu0 %422
        %424 = vrot.lane.b32.xlu0 %v378, 16
        %v425 = vpop.permute.xlu0 %424
        %426 = vrot.lane.b32.xlu0 %v379, 16
        %v427 = vpop.permute.xlu0 %426
        %vm444 = vcmask 261248
        %445 = vst.msk [vmem:[#allocation3] sm:$0xff] %vm444, %v397
        %446 = vst.msk [vmem:[#allocation3 + $0x8] sm:$0xff] %vm444, %v399
        %447 = vst.msk [vmem:[#allocation3 + $0x10] sm:$0xff] %vm444, %v401
        %448 = vst.msk [vmem:[#allocation3 + $0x18] sm:$0xff] %vm444, %v403
        %449 = vst.msk [vmem:[#allocation3 + $0x20] sm:$0xff] %vm444, %v405
        %450 = vst.msk [vmem:[#allocation3 + $0x28] sm:$0xff] %vm444, %v407
        %451 = vst.msk [vmem:[#allocation3 + $0x30] sm:$0xff] %vm444, %v409
        %452 = vst.msk [vmem:[#allocation3 + $0x38] sm:$0xff] %vm444, %v411
        %453 = vst.msk [vmem:[#allocation3 + $0x40] sm:$0xff] %vm444, %v413
        %454 = vst.msk [vmem:[#allocation3 + $0x48] sm:$0xff] %vm444, %v415
        %455 = vst.msk [vmem:[#allocation3 + $0x50] sm:$0xff] %vm444, %v417
        %456 = vst.msk [vmem:[#allocation3 + $0x58] sm:$0xff] %vm444, %v419
        %457 = vst.msk [vmem:[#allocation3 + $0x60] sm:$0xff] %vm444, %v421
        %458 = vst.msk [vmem:[#allocation3 + $0x68] sm:$0xff] %vm444, %v423
        %459 = vst.msk [vmem:[#allocation3 + $0x70] sm:$0xff] %vm444, %v425
        %460 = vst.msk [vmem:[#allocation3 + $0x78] sm:$0xff] %vm444, %v427
        %s461 = scalar_lea.vmem [#allocation2], 24
        %v462 = vld [vmem:[%s461] sm:$0xff]
        %v463 = vld [vmem:[%s461 + $0x8] sm:$0xff]
        %v464 = vld [vmem:[%s461 + $0x18] sm:$0xff]
        %v465 = vld [vmem:[%s461 + $0x20] sm:$0xff]
        %v466 = vld [vmem:[%s461 + $0x30] sm:$0xff]
        %v467 = vld [vmem:[%s461 + $0x38] sm:$0xff]
        %v468 = vld [vmem:[%s461 + $0x48] sm:$0xff]
        %v469 = vld [vmem:[%s461 + $0x50] sm:$0xff]
        %v470 = vld [vmem:[%s461 + $0x60] sm:$0xff]
        %v471 = vld [vmem:[%s461 + $0x68] sm:$0xff]
        %v472 = vld [vmem:[%s461 + $0x78] sm:$0xff]
        %v473 = vld [vmem:[%s461 + $0x80] sm:$0xff]
        %v474 = vld [vmem:[%s461 + $0x90] sm:$0xff]
        %v475 = vld [vmem:[%s461 + $0x98] sm:$0xff]
        %v476 = vld [vmem:[%s461 + $0xa8] sm:$0xff]
        %v477 = vld [vmem:[%s461 + $0xb0] sm:$0xff]
        %494 = vrot.lane.b32.xlu0 %v462, 32
        %v495 = vpop.permute.xlu0 %494
        %496 = vrot.lane.b32.xlu0 %v463, 32
        %v497 = vpop.permute.xlu0 %496
        %498 = vrot.lane.b32.xlu0 %v464, 32
        %v499 = vpop.permute.xlu0 %498
        %500 = vrot.lane.b32.xlu0 %v465, 32
        %v501 = vpop.permute.xlu0 %500
        %502 = vrot.lane.b32.xlu0 %v466, 32
        %v503 = vpop.permute.xlu0 %502
        %504 = vrot.lane.b32.xlu0 %v467, 32
        %v505 = vpop.permute.xlu0 %504
        %506 = vrot.lane.b32.xlu0 %v468, 32
        %v507 = vpop.permute.xlu0 %506
        %508 = vrot.lane.b32.xlu0 %v469, 32
        %v509 = vpop.permute.xlu0 %508
        %510 = vrot.lane.b32.xlu0 %v470, 32
        %v511 = vpop.permute.xlu0 %510
        %512 = vrot.lane.b32.xlu0 %v471, 32
        %v513 = vpop.permute.xlu0 %512
        %514 = vrot.lane.b32.xlu0 %v472, 32
        %v515 = vpop.permute.xlu0 %514
        %516 = vrot.lane.b32.xlu0 %v473, 32
        %v517 = vpop.permute.xlu0 %516
        %518 = vrot.lane.b32.xlu0 %v474, 32
        %v519 = vpop.permute.xlu0 %518
        %520 = vrot.lane.b32.xlu0 %v475, 32
        %v521 = vpop.permute.xlu0 %520
        %522 = vrot.lane.b32.xlu0 %v476, 32
        %v523 = vpop.permute.xlu0 %522
        %524 = vrot.lane.b32.xlu0 %v477, 32
        %v525 = vpop.permute.xlu0 %524
        %vm542 = vcmask 392448
        %543 = vst.msk [vmem:[#allocation3] sm:$0xff] %vm542, %v495
        %544 = vst.msk [vmem:[#allocation3 + $0x8] sm:$0xff] %vm542, %v497
        %545 = vst.msk [vmem:[#allocation3 + $0x10] sm:$0xff] %vm542, %v499
        %546 = vst.msk [vmem:[#allocation3 + $0x18] sm:$0xff] %vm542, %v501
        %547 = vst.msk [vmem:[#allocation3 + $0x20] sm:$0xff] %vm542, %v503
        %548 = vst.msk [vmem:[#allocation3 + $0x28] sm:$0xff] %vm542, %v505
        %549 = vst.msk [vmem:[#allocation3 + $0x30] sm:$0xff] %vm542, %v507
        %550 = vst.msk [vmem:[#allocation3 + $0x38] sm:$0xff] %vm542, %v509
        %551 = vst.msk [vmem:[#allocation3 + $0x40] sm:$0xff] %vm542, %v511
        %552 = vst.msk [vmem:[#allocation3 + $0x48] sm:$0xff] %vm542, %v513
        %553 = vst.msk [vmem:[#allocation3 + $0x50] sm:$0xff] %vm542, %v515
        %554 = vst.msk [vmem:[#allocation3 + $0x58] sm:$0xff] %vm542, %v517
        %555 = vst.msk [vmem:[#allocation3 + $0x60] sm:$0xff] %vm542, %v519
        %556 = vst.msk [vmem:[#allocation3 + $0x68] sm:$0xff] %vm542, %v521
        %557 = vst.msk [vmem:[#allocation3 + $0x70] sm:$0xff] %vm542, %v523
        %558 = vst.msk [vmem:[#allocation3 + $0x78] sm:$0xff] %vm542, %v525
        %v559 = vld [vmem:[%s461 + $0x1] sm:$0xff]
        %v560 = vld [vmem:[%s461 + $0x9] sm:$0xff]
        %v561 = vld [vmem:[%s461 + $0x19] sm:$0xff]
        %v562 = vld [vmem:[%s461 + $0x21] sm:$0xff]
        %v563 = vld [vmem:[%s461 + $0x31] sm:$0xff]
        %v564 = vld [vmem:[%s461 + $0x39] sm:$0xff]
        %v565 = vld [vmem:[%s461 + $0x49] sm:$0xff]
        %v566 = vld [vmem:[%s461 + $0x51] sm:$0xff]
        %v567 = vld [vmem:[%s461 + $0x61] sm:$0xff]
        %v568 = vld [vmem:[%s461 + $0x69] sm:$0xff]
        %v569 = vld [vmem:[%s461 + $0x79] sm:$0xff]
        %v570 = vld [vmem:[%s461 + $0x81] sm:$0xff]
        %v571 = vld [vmem:[%s461 + $0x91] sm:$0xff]
        %v572 = vld [vmem:[%s461 + $0x99] sm:$0xff]
        %v573 = vld [vmem:[%s461 + $0xa9] sm:$0xff]
        %v574 = vld [vmem:[%s461 + $0xb1] sm:$0xff]
        %591 = vrot.lane.b32.xlu0 %v559, 48
        %v592 = vpop.permute.xlu0 %591
        %593 = vrot.lane.b32.xlu0 %v560, 48
        %v594 = vpop.permute.xlu0 %593
        %595 = vrot.lane.b32.xlu0 %v561, 48
        %v596 = vpop.permute.xlu0 %595
        %597 = vrot.lane.b32.xlu0 %v562, 48
        %v598 = vpop.permute.xlu0 %597
        %599 = vrot.lane.b32.xlu0 %v563, 48
        %v600 = vpop.permute.xlu0 %599
        %601 = vrot.lane.b32.xlu0 %v564, 48
        %v602 = vpop.permute.xlu0 %601
        %603 = vrot.lane.b32.xlu0 %v565, 48
        %v604 = vpop.permute.xlu0 %603
        %605 = vrot.lane.b32.xlu0 %v566, 48
        %v606 = vpop.permute.xlu0 %605
        %607 = vrot.lane.b32.xlu0 %v567, 48
        %v608 = vpop.permute.xlu0 %607
        %609 = vrot.lane.b32.xlu0 %v568, 48
        %v610 = vpop.permute.xlu0 %609
        %611 = vrot.lane.b32.xlu0 %v569, 48
        %v612 = vpop.permute.xlu0 %611
        %613 = vrot.lane.b32.xlu0 %v570, 48
        %v614 = vpop.permute.xlu0 %613
        %615 = vrot.lane.b32.xlu0 %v571, 48
        %v616 = vpop.permute.xlu0 %615
        %617 = vrot.lane.b32.xlu0 %v572, 48
        %v618 = vpop.permute.xlu0 %617
        %619 = vrot.lane.b32.xlu0 %v573, 48
        %v620 = vpop.permute.xlu0 %619
        %621 = vrot.lane.b32.xlu0 %v574, 48
        %v622 = vpop.permute.xlu0 %621
        %vm639 = vcmask 523648
        %640 = vst.msk [vmem:[#allocation3] sm:$0xff] %vm639, %v592
        %641 = vst.msk [vmem:[#allocation3 + $0x8] sm:$0xff] %vm639, %v594
        %642 = vst.msk [vmem:[#allocation3 + $0x10] sm:$0xff] %vm639, %v596
        %643 = vst.msk [vmem:[#allocation3 + $0x18] sm:$0xff] %vm639, %v598
        %644 = vst.msk [vmem:[#allocation3 + $0x20] sm:$0xff] %vm639, %v600
        %645 = vst.msk [vmem:[#allocation3 + $0x28] sm:$0xff] %vm639, %v602
        %646 = vst.msk [vmem:[#allocation3 + $0x30] sm:$0xff] %vm639, %v604
        %647 = vst.msk [vmem:[#allocation3 + $0x38] sm:$0xff] %vm639, %v606
        %648 = vst.msk [vmem:[#allocation3 + $0x40] sm:$0xff] %vm639, %v608
        %649 = vst.msk [vmem:[#allocation3 + $0x48] sm:$0xff] %vm639, %v610
        %650 = vst.msk [vmem:[#allocation3 + $0x50] sm:$0xff] %vm639, %v612
        %651 = vst.msk [vmem:[#allocation3 + $0x58] sm:$0xff] %vm639, %v614
        %652 = vst.msk [vmem:[#allocation3 + $0x60] sm:$0xff] %vm639, %v616
        %653 = vst.msk [vmem:[#allocation3 + $0x68] sm:$0xff] %vm639, %v618
        %654 = vst.msk [vmem:[#allocation3 + $0x70] sm:$0xff] %vm639, %v620
        %655 = vst.msk [vmem:[#allocation3 + $0x78] sm:$0xff] %vm639, %v622
        %v656 = vld [vmem:[#allocation3] sm:$0xff]
        %v657 = vld [vmem:[#allocation3 + $0x8] sm:$0xff]
        %v658 = vld [vmem:[#allocation3 + $0x10] sm:$0xff]
        %v659 = vld [vmem:[#allocation3 + $0x18] sm:$0xff]
        %v660 = vld [vmem:[#allocation3 + $0x20] sm:$0xff]
        %v661 = vld [vmem:[#allocation3 + $0x28] sm:$0xff]
        %v662 = vld [vmem:[#allocation3 + $0x30] sm:$0xff]
        %v663 = vld [vmem:[#allocation3 + $0x38] sm:$0xff]
        %v664 = vld [vmem:[#allocation3 + $0x40] sm:$0xff]
        %v665 = vld [vmem:[#allocation3 + $0x48] sm:$0xff]
        %v666 = vld [vmem:[#allocation3 + $0x50] sm:$0xff]
        %v667 = vld [vmem:[#allocation3 + $0x58] sm:$0xff]
        %v668 = vld [vmem:[#allocation3 + $0x60] sm:$0xff]
        %v669 = vld [vmem:[#allocation3 + $0x68] sm:$0xff]
        %v670 = vld [vmem:[#allocation3 + $0x70] sm:$0xff]
        %v671 = vld [vmem:[#allocation3 + $0x78] sm:$0xff]
        %v672 = vld [vmem:[%s2] sm:$0xff]
        %v673 = vld [vmem:[%s2 + $0x8] sm:$0xff]
        %v674 = vld [vmem:[%s2 + $0x10] sm:$0xff]
        %v675 = vld [vmem:[%s2 + $0x18] sm:$0xff]
        %v676 = vld [vmem:[%s2 + $0x20] sm:$0xff]
        %v677 = vld [vmem:[%s2 + $0x28] sm:$0xff]
        %v678 = vld [vmem:[%s2 + $0x30] sm:$0xff]
        %v679 = vld [vmem:[%s2 + $0x38] sm:$0xff]
        %vm680 = vcmask 523264
        %v682 = vsel %vm680, %v656, 0
        %v685 = vsel %vm680, %v657, 0
        %v688 = vsel %vm680, %v658, 0
        %v691 = vsel %vm680, %v659, 0
        %v694 = vsel %vm680, %v660, 0
        %v697 = vsel %vm680, %v661, 0
        %v700 = vsel %vm680, %v662, 0
        %v703 = vsel %vm680, %v663, 0
        %v706 = vsel %vm680, %v664, 0
        %v709 = vsel %vm680, %v665, 0
        %v712 = vsel %vm680, %v666, 0
        %v715 = vsel %vm680, %v667, 0
        %v718 = vsel %vm680, %v668, 0
        %v721 = vsel %vm680, %v669, 0
        %v724 = vsel %vm680, %v670, 0
        %v727 = vsel %vm680, %v671, 0
        %729 = vmatprep.subr.mxu0 0.0
        %730 = vmatpush1.msra.mxu0 %v672
        %731 = vmatprep.subr.mxu0 0.0
        %732 = vmatpush1.msra.mxu0 %v673
        %733 = vmatprep.subr.mxu0 0.0
        %734 = vmatpush1.msra.mxu0 %v674
        %735 = vmatprep.subr.mxu0 0.0
        %736 = vmatpush1.msra.mxu0 %v675
        %737 = vmatprep.subr.mxu0 0.0
        %738 = vmatpush1.msra.mxu0 %v676
        %739 = vmatprep.subr.mxu0 0.0
        %740 = vmatpush1.msra.mxu0 %v677
        %741 = vmatprep.subr.mxu0 0.0
        %742 = vmatpush1.msra.mxu0 %v678
        %743 = vmatprep.subr.mxu0 0.0
        %744 = vmatpush1.msra.mxu0 %v679
        %745 = vmatprep.subr.mxu0 0.0
        %746 = vmatpush1.msra.mxu0 0.0
        %747 = vmatprep.subr.mxu0 0.0
        %748 = vmatpush1.msra.mxu0 0.0
        %749 = vmatprep.subr.mxu0 0.0
        %750 = vmatpush1.msra.mxu0 0.0
        %751 = vmatprep.subr.mxu0 0.0
        %752 = vmatpush1.msra.mxu0 0.0
        %753 = vmatprep.subr.mxu0 0.0
        %754 = vmatpush1.msra.mxu0 0.0
        %755 = vmatprep.subr.mxu0 0.0
        %756 = vmatpush1.msra.mxu0 0.0
        %757 = vmatprep.subr.mxu0 0.0
        %758 = vmatpush1.msra.mxu0 0.0
        %759 = vmatprep.subr.mxu0 0.0
        %760 = vmatpush1.msra.mxu0 0.0
        %761 = vmatprep.subr.mxu0 0.0
        %762 = vmatpush1.msra.mxu0 0.0
        %763 = vmatprep.subr.mxu0 0.0
        %764 = vmatpush1.msra.mxu0 0.0
        %765 = vmatprep.subr.mxu0 0.0
        %766 = vmatpush1.msra.mxu0 0.0
        %767 = vmatprep.subr.mxu0 0.0
        %768 = vmatpush1.msra.mxu0 0.0
        %769 = vmatprep.subr.mxu0 0.0
        %770 = vmatpush1.msra.mxu0 0.0
        %771 = vmatprep.subr.mxu0 0.0
        %772 = vmatpush1.msra.mxu0 0.0
        %773 = vmatprep.subr.mxu0 0.0
        %774 = vmatpush1.msra.mxu0 0.0
        %775 = vmatprep.subr.mxu0 0.0
        %776 = vmatpush1.msra.mxu0 0.0
        %777 = vmatprep.subr.mxu0 0.0
        %778 = vmatpush1.msra.mxu0 0.0
        %779 = vmatprep.subr.mxu0 0.0
        %780 = vmatpush1.msra.mxu0 0.0
        %781 = vmatprep.subr.mxu0 0.0
        %782 = vmatpush1.msra.mxu0 0.0
        %783 = vmatprep.subr.mxu0 0.0
        %784 = vmatpush1.msra.mxu0 0.0
        %785 = vmatprep.subr.mxu0 0.0
        %786 = vmatpush1.msra.mxu0 0.0
        %787 = vmatprep.subr.mxu0 0.0
        %788 = vmatpush1.msra.mxu0 0.0
        %789 = vmatprep.subr.mxu0 0.0
        %790 = vmatpush1.msra.mxu0 0.0
        %791 = vmatprep.subr.mxu0 0.0
        %792 = vmatpush1.msra.mxu0 0.0
        %793 = vmatprep.mubr.f32.mxu0 0.0
        %794 = vmatmul.mubr.f32.gmra.mrb[0].mxu0 %v682
        %v795 = vpop.f32.mrb[0].mxu0
        %v796 = vadd.f32 0.0, %v795
        %v797 = vpop.f32.mrb[0].mxu0
        %798 = vmatprep.mubr.f32.mxu0 0.0
        %799 = vmatmul.mubr.f32.gmra.mrb[0].mxu0 %v685
        %v800 = vpop.f32.mrb[0].mxu0
        %v801 = vadd.f32 0.0, %v800
        %v802 = vpop.f32.mrb[0].mxu0
        %803 = vmatprep.mubr.f32.mxu0 0.0
        %804 = vmatmul.mubr.f32.gmra.mrb[0].mxu0 %v688
        %v805 = vpop.f32.mrb[0].mxu0
        %v806 = vadd.f32 0.0, %v805
        %v807 = vpop.f32.mrb[0].mxu0
        %808 = vmatprep.mubr.f32.mxu0 0.0
        %809 = vmatmul.mubr.f32.gmra.mrb[0].mxu0 %v691
        %v810 = vpop.f32.mrb[0].mxu0
        %v811 = vadd.f32 0.0, %v810
        %v812 = vpop.f32.mrb[0].mxu0
        %813 = vmatprep.mubr.f32.mxu0 0.0
        %814 = vmatmul.mubr.f32.gmra.mrb[0].mxu0 %v694
        %v815 = vpop.f32.mrb[0].mxu0
        %v816 = vadd.f32 0.0, %v815
        %v817 = vpop.f32.mrb[0].mxu0
        %818 = vmatprep.mubr.f32.mxu0 0.0
        %819 = vmatmul.mubr.f32.gmra.mrb[0].mxu0 %v697
        %v820 = vpop.f32.mrb[0].mxu0
        %v821 = vadd.f32 0.0, %v820
        %v822 = vpop.f32.mrb[0].mxu0
        %823 = vmatprep.mubr.f32.mxu0 0.0
        %824 = vmatmul.mubr.f32.gmra.mrb[0].mxu0 %v700
        %v825 = vpop.f32.mrb[0].mxu0
        %v826 = vadd.f32 0.0, %v825
        %v827 = vpop.f32.mrb[0].mxu0
        %828 = vmatprep.mubr.f32.mxu0 0.0
        %829 = vmatmul.mubr.f32.gmra.mrb[0].mxu0 %v703
        %v830 = vpop.f32.mrb[0].mxu0
        %v831 = vadd.f32 0.0, %v830
        %v832 = vpop.f32.mrb[0].mxu0
        %833 = vmatprep.mubr.f32.mxu0 0.0
        %834 = vmatmul.mubr.f32.gmra.mrb[0].mxu0 %v706
        %v835 = vpop.f32.mrb[0].mxu0
        %v836 = vadd.f32 0.0, %v835
        %v837 = vpop.f32.mrb[0].mxu0
        %838 = vmatprep.mubr.f32.mxu0 0.0
        %839 = vmatmul.mubr.f32.gmra.mrb[0].mxu0 %v709
        %v840 = vpop.f32.mrb[0].mxu0
        %v841 = vadd.f32 0.0, %v840
        %v842 = vpop.f32.mrb[0].mxu0
        %843 = vmatprep.mubr.f32.mxu0 0.0
        %844 = vmatmul.mubr.f32.gmra.mrb[0].mxu0 %v712
        %v845 = vpop.f32.mrb[0].mxu0
        %v846 = vadd.f32 0.0, %v845
        %v847 = vpop.f32.mrb[0].mxu0
        %848 = vmatprep.mubr.f32.mxu0 0.0
        %849 = vmatmul.mubr.f32.gmra.mrb[0].mxu0 %v715
        %v850 = vpop.f32.mrb[0].mxu0
        %v851 = vadd.f32 0.0, %v850
        %v852 = vpop.f32.mrb[0].mxu0
        %853 = vmatprep.mubr.f32.mxu0 0.0
        %854 = vmatmul.mubr.f32.gmra.mrb[0].mxu0 %v718
        %v855 = vpop.f32.mrb[0].mxu0
        %v856 = vadd.f32 0.0, %v855
        %v857 = vpop.f32.mrb[0].mxu0
        %858 = vmatprep.mubr.f32.mxu0 0.0
        %859 = vmatmul.mubr.f32.gmra.mrb[0].mxu0 %v721
        %v860 = vpop.f32.mrb[0].mxu0
        %v861 = vadd.f32 0.0, %v860
        %v862 = vpop.f32.mrb[0].mxu0
        %863 = vmatprep.mubr.f32.mxu0 0.0
        %864 = vmatmul.mubr.f32.gmra.mrb[0].mxu0 %v724
        %v865 = vpop.f32.mrb[0].mxu0
        %v866 = vadd.f32 0.0, %v865
        %v867 = vpop.f32.mrb[0].mxu0
        %868 = vmatprep.mubr.f32.mxu0 0.0
        %869 = vmatmul.mubr.f32.gmra.mrb[0].mxu0 %v727
        %v870 = vpop.f32.mrb[0].mxu0
        %v871 = vadd.f32 0.0, %v870
        %v872 = vpop.f32.mrb[0].mxu0
        %873 = vdwg.mxu0
        %874 = vxpose.xlu0.b32.start [1/16] %v796, 128
        %875 = vxpose.xlu0.b32.cont [2/16] %v801, 128
        %876 = vxpose.xlu0.b32.cont [3/16] %v806, 128
        %877 = vxpose.xlu0.b32.cont [4/16] %v811, 128
        %878 = vxpose.xlu0.b32.cont [5/16] %v816, 128
        %879 = vxpose.xlu0.b32.cont [6/16] %v821, 128
        %880 = vxpose.xlu0.b32.cont [7/16] %v826, 128
        %881 = vxpose.xlu0.b32.cont [8/16] %v831, 128
        %882 = vxpose.xlu0.b32.cont [9/16] %v836, 128
        %883 = vxpose.xlu0.b32.cont [10/16] %v841, 128
        %884 = vxpose.xlu0.b32.cont [11/16] %v846, 128
        %885 = vxpose.xlu0.b32.cont [12/16] %v851, 128
        %886 = vxpose.xlu0.b32.cont [13/16] %v856, 128
        %887 = vxpose.xlu0.b32.cont [14/16] %v861, 128
        %888 = vxpose.xlu0.b32.cont [15/16] %v866, 128
        %889 = vxpose.xlu0.b32.end [16/16] %v871, 128
        %v890 = vpop.trf.xlu0
        %v891 = vpop.trf.xlu0
        %v892 = vpop.trf.xlu0
        %v893 = vpop.trf.xlu0
        %v894 = vpop.trf.xlu0
        %v895 = vpop.trf.xlu0
        %v896 = vpop.trf.xlu0
        %v897 = vpop.trf.xlu0
        %v898 = vpop.trf.xlu0
        %v899 = vpop.trf.xlu0
        %v900 = vpop.trf.xlu0
        %v901 = vpop.trf.xlu0
        %v902 = vpop.trf.xlu0
        %v903 = vpop.trf.xlu0
        %v904 = vpop.trf.xlu0
        %v905 = vpop.trf.xlu0
        %906 = vst [vmem:[%s240] sm:$0xff] %v890
        %s907 = sand.u32 %s120, 1
        %s908 = scalar_lea.sflag [#allocation5], %s907
        %s909 = sand.u32 %s120, 1
        %s910 = smul.addr %s909, 8
        %s911 = scalar_lea.vmem [#allocation4], %s910
        // Predicated region
        $region33: #{tpu_custom_call.1} parent=31 // pred_check
          %p912 = pneg %p130
        $region34: #{tpu_custom_call.1} parent=31 // pred_check_branch
          %914 = sbr.rel (%p912) target = $region36
        $region35: #{tpu_custom_call.1} parent=31 // pred_region
          %s916 = ssub.s32 128, 128
          %917 = vsyncadd %s908, %s916
          %s918 = smul.addr %s21, 2
          %s919 = sadd.s32 %s22, %s918
          %s920 = smul.addr %s919, 128
          %s921 = scalar_lea.hbm %s3, %s920
          %s923 = sshll.u32 %s911, 4
          %s924 = int_to_ptr.vmem [resolvable:$true] %s923
          %926 = dma.vmem_to_hbm [thread:$0]  %s924, 128, %s921, %s908
        $region36: #{tpu_custom_call.1} parent=31 // pred_fallthru
          _
      $region32: #{tpu_custom_call.1} parent=5 // pred_fallthru
        _
      %p927 = scmp.le.s32.totalorder 2, %s12
      // Predicated region
      $region37: #{tpu_custom_call.1} parent=5 // pred_check
        %p928 = pneg %p927
      $region38: #{tpu_custom_call.1} parent=5 // pred_check_branch
        %930 = sbr.rel (%p928) target = $region40
      $region39: #{tpu_custom_call.1} parent=5 // pred_region
        %s931 = ssub.s32 %s12, 2
        // Predicated region
        $region41: #{tpu_custom_call.1} parent=39 // pred_check
          %p932 = pneg %p136
        $region42: #{tpu_custom_call.1} parent=39 // pred_check_branch
          %934 = sbr.rel (%p932) target = $region44
        $region43: #{tpu_custom_call.1} parent=39 // pred_region
          %s935 = sand.u32 %s121, 1
          %s936 = scalar_lea.sflag [#allocation5], %s935
          %s937 = sand.u32 %s121, 1
          %s938 = smul.addr %s937, 8
          %s939 = scalar_lea.vmem [#allocation4], %s938
          %940 = dma.done %s936, 128
        $region44: #{tpu_custom_call.1} parent=39 // pred_fallthru
          _
      $region40: #{tpu_custom_call.1} parent=5 // pred_fallthru
        _
    $region6: #{tpu_custom_call.1} parent=1 // loop_footer
      %s16 = sadd.s32 1, %s12
    $region7: #{tpu_custom_call.1} parent=1 // loop_footer_branch
      %11 = sbr.rel target = $region3
    $region8: #{tpu_custom_call.1} parent=1 // loop_exit
      _
    %941 = vsyncpa [#allocation5], 1
    %s942 = scalar_lea.sflag [#allocation5], 1
    %943 = vsyncpa %s942, 1

</llo_original>
